<compile_context>
chip_gen: v6e
topology: v6e:2x2x1
jax: 0.10.0
libtpu: 0.0.40
codegen_flags: <defaults>
</compile_context>

<pallas_src>
import math
from functools import partial

import jax
import jax.numpy as jnp
from jax.experimental import pallas as pl
from jax.experimental.pallas import tpu as pltpu

# ~2x(in + out) double-buffered x blocks (+ tiny t column) per grid step.
_WORKING_SET_BUDGET = 24 << 20   # bytes; <= 24 MiB keeps v7x (64 MiB VMEM) happy
_VMEM_LIMIT_BYTES = 32 << 20     # raise v5e's 16 MiB scoped default; OK on v6e/v7x


def pos_enc_kernel(x_ref, t_ref, tab_ref, o_ref):
    """x_ref/o_ref: (TS, D); t_ref: (TS, 1) f32; tab_ref: (2, D) f32 = [freq; phase]."""
    freq = tab_ref[0:1, :]                       # (1, D)
    phase = tab_ref[1:2, :]                      # (1, D)
    # angle[s, d] = t[s] * freq[d] + phase[d]  (f32), pe = sin(angle)
    angle = t_ref[...] * freq + phase            # broadcast -> (TS, D), f32
    # TODO(synk): if v7x bundle dumps show sin is a VALU polynomial (not EUP) and the
    # kernel leaves the HBM roofline, compute angle/sin in bf16 there.
    pe = jnp.sin(angle)
    # TODO(synk): training-mode dropout would mask here with pltpu.prng_random_bits.
    o_ref[...] = x_ref[...] + pe.astype(o_ref.dtype)


def _round_up(n, m):
    return ((n + m - 1) // m) * m


def _pick_rows_block(n_rows, d, itemsize):
    """Rows per tile: byte-budget aware, sublane-aligned, >=2 grid steps when possible."""
    # double-buffered x-in + out ≈ 4 * ts * d * itemsize bytes (t column is negligible)
    ts = _WORKING_SET_BUDGET // (4 * d * itemsize)
    ts = max(8, (ts // 8) * 8)                   # multiple of 8 (sublane rule)
    ts = min(ts, _round_up(n_rows, 8))           # never bigger than the whole array
    # v7x has 2 TensorCores per chip: make sure the parallel grid has >= 2 steps.
    if n_rows > 8 and pl.cdiv(n_rows, ts) < 2:
        ts = max(8, _round_up(pl.cdiv(n_rows, 2), 8))
    return ts


@partial(jax.jit, donate_argnums=0)
def positional_encoding(x, t):
    """x: (B, S, d_model) float, t: (B, S) float. Returns x + PE(t) (eval-mode dropout).

    x is donated: its HBM buffer is reused for the output (true in-place add).
    """
    B, S, D = x.shape
    assert t.shape == (B, S)
    assert D % 2 == 0, "d_model must be even"

    N = B * S
    itemsize = jnp.dtype(x.dtype).itemsize
    ts = _pick_rows_block(N, D, itemsize)
    grid = (pl.cdiv(N, ts),)                     # partial last block is masked by Pallas

    # O(D) per-lane tables (computed once, resident (2, D) VMEM block):
    #   freq[d]  = exp(-2*(d//2)*ln(10000)/D)
    #   phase[d] = (d & 1) * pi/2      (sin(a + pi/2) == cos(a) on odd lanes)
    d_idx = jnp.arange(D, dtype=jnp.int32)
    freq = jnp.exp((d_idx >> 1).astype(jnp.float32)
                   * jnp.float32(-2.0 * math.log(10000.0) / D))
    phase = (d_idx & 1).astype(jnp.float32) * jnp.float32(math.pi / 2.0)
    table = jnp.stack([freq, phase], axis=0)     # (2, D) f32

    # Flatten batch into rows: lane-dense last dim for D >= 128; at tiny D the
    # stores are masked (folding rows into lanes isn't worth the relayout).
    x2 = x.reshape(N, D)
    t2 = t.astype(jnp.float32).reshape(N, 1)     # rows on sublanes, lane-broadcast free

    out2 = pl.pallas_call(
        pos_enc_kernel,
        out_shape=jax.ShapeDtypeStruct((N, D), x.dtype),
        grid=grid,
        in_specs=[
            pl.BlockSpec((ts, D), lambda i: (i, 0)),    # x tile
            pl.BlockSpec((ts, 1), lambda i: (i, 0)),    # t column tile
            pl.BlockSpec((2, D), lambda i: (0, 0)),     # freq/phase table (resident)
        ],
        out_specs=pl.BlockSpec((ts, D), lambda i: (i, 0)),
        input_output_aliases={0: 0},                    # write PE into x's (donated) buffer
        compiler_params=pltpu.CompilerParams(
            dimension_semantics=("parallel",),
            vmem_limit_bytes=_VMEM_LIMIT_BYTES,
        ),
    )(x2, t2, table)

    return out2.reshape(B, S, D)


def positional_encoding_ref(x, t):
    """Pure-JAX reference mirroring the PyTorch forward (eval mode)."""
    d_model = x.shape[-1]
    t3 = t[..., None]
    div_term = jnp.exp(
        jnp.arange(0, d_model, 2, dtype=jnp.float32)
        * (-math.log(10000.0) / d_model)
    )
    pe = jnp.stack([jnp.sin(t3 * div_term), jnp.cos(t3 * div_term)], axis=-1)
    pe = pe.reshape(t.shape[0], t.shape[1], d_model)
    return x + pe


if __name__ == "__main__":
    B, S, D = 2, 8, 32          # batch, seq, d_model (small test shapes)
    key = jax.random.PRNGKey(0)
    kx, kt = jax.random.split(key)
    x = jax.random.normal(kx, (B, S, D), dtype=jnp.float32)
    # timestep-like values (floats, as in diffusion-style PE usage)
    t = jax.random.uniform(kt, (B, S), dtype=jnp.float32, minval=0.0, maxval=100.0)

    # Reference computed BEFORE the kernel call: x's buffer is donated to the kernel.
    ref = positional_encoding_ref(x, t)

    out = jax.block_until_ready(positional_encoding(x, t))

    assert out.shape == (B, S, D)
    # atol covers last-ulp drift of the fused sin(angle + pi/2) vs cos(angle)
    # formulation at angles up to ~100.
    assert jnp.allclose(out, ref, atol=1e-4, rtol=1e-5), "mismatch vs reference"
    print("KERNEL_OK")
</pallas_src>

<mosaic_0001>
module attributes {stable_mosaic.version = 11 : i64} {
  func.func @pos_enc_kernel(%arg0: i32, %arg1: memref<8x32xf32, #tpu.memory_space<vmem>>, %arg2: memref<8x1xf32, #tpu.memory_space<vmem>>, %arg3: memref<2x32xf32, #tpu.memory_space<vmem>>, %arg4: memref<8x32xf32, #tpu.memory_space<vmem>>) attributes {dimension_semantics = [#tpu.dimension_semantics<parallel>], iteration_bounds = array<i64: 2>, scalar_prefetch = 0 : i64, scratch_operands = 0 : i64, tpu.core_type = #tpu.core_type<tc>, window_params = [{transform_indices = @transform_0, window_bounds = array<i64: 8, 32>}, {transform_indices = @transform_1, window_bounds = array<i64: 8, 1>}, {pipeline_mode = #tpu.pipeline_mode<synchronous>, transform_indices = @transform_2, window_bounds = array<i64: 2, 32>}, {transform_indices = @transform_3, window_bounds = array<i64: 8, 32>}]} {
    %c0 = arith.constant 0 : index
    %c0_0 = arith.constant 0 : index
    %0 = vector.load %arg3[%c0, %c0_0] : memref<2x32xf32, #tpu.memory_space<vmem>>, vector<1x32xf32>
    %c1 = arith.constant 1 : index
    %c0_1 = arith.constant 0 : index
    %1 = vector.load %arg3[%c1, %c0_1] : memref<2x32xf32, #tpu.memory_space<vmem>>, vector<1x32xf32>
    %c0_2 = arith.constant 0 : index
    %c0_3 = arith.constant 0 : index
    %2 = vector.load %arg2[%c0_2, %c0_3] : memref<8x1xf32, #tpu.memory_space<vmem>>, vector<8x1xf32>
    %3 = vector.broadcast %2 : vector<8x1xf32> to vector<8x32xf32>
    %4 = vector.broadcast %0 : vector<1x32xf32> to vector<8x32xf32>
    %5 = arith.mulf %3, %4 : vector<8x32xf32>
    %6 = vector.broadcast %1 : vector<1x32xf32> to vector<8x32xf32>
    %7 = arith.addf %5, %6 : vector<8x32xf32>
    %8 = math.sin %7 : vector<8x32xf32>
    %c0_4 = arith.constant 0 : index
    %c0_5 = arith.constant 0 : index
    %9 = vector.load %arg1[%c0_4, %c0_5] : memref<8x32xf32, #tpu.memory_space<vmem>>, vector<8x32xf32>
    %10 = arith.addf %9, %8 : vector<8x32xf32>
    %c0_6 = arith.constant 0 : index
    %c0_7 = arith.constant 0 : index
    %11 = vector.load %arg4[%c0_6, %c0_7] : memref<8x32xf32, #tpu.memory_space<vmem>>, vector<8x32xf32>
    tpu.vector_store %arg4[%c0_6, %c0_7], %10 {strides = array<i32>} : memref<8x32xf32, #tpu.memory_space<vmem>>, vector<8x32xf32>,
    return
  }
  func.func @transform_0(%arg0: i32) -> (i32, i32) {
    %c0_i32 = arith.constant 0 : i32
    %c0_i32_0 = arith.constant 0 : i32
    return %arg0, %c0_i32 : i32, i32
  }
  func.func @transform_1(%arg0: i32) -> (i32, i32) {
    %c0_i32 = arith.constant 0 : i32
    %c0_i32_0 = arith.constant 0 : i32
    return %arg0, %c0_i32 : i32, i32
  }
  func.func @transform_2(%arg0: i32) -> (i32, i32) {
    %c0_i32 = arith.constant 0 : i32
    %c0_i32_0 = arith.constant 0 : i32
    %c0_i32_1 = arith.constant 0 : i32
    return %c0_i32, %c0_i32_0 : i32, i32
  }
  func.func @transform_3(%arg0: i32) -> (i32, i32) {
    %c0_i32 = arith.constant 0 : i32
    %c0_i32_0 = arith.constant 0 : i32
    return %arg0, %c0_i32 : i32, i32
  }
}

</mosaic_0001>

<llo_original>
// kernel: positional_encoding.1
$region0: #{positional_encoding.1}
  #allocation0 [shape = 'u32[]', space=smem, size = 0x4, offset = 0x4, fixed_abs, tag = 'smem constant byte address 0x4 - core index']
  #allocation1 [shape = 'u32[144,128]{1,0:T(1,128)}', space=vmem, size = 0x12000, scoped, tag = 'internal scratch']
  %s0 = inlined_call_operand.vmem [shape: f32[16,32], index: 0, kind: input, shape index: {}, may-alias: {0,3}]
  %s1 = inlined_call_operand.vmem [shape: f32[16,1], index: 1, kind: input, shape index: {}]
  %s2 = inlined_call_operand.vmem [shape: f32[2,32], index: 2, kind: input, shape index: {}]
  %s3 = inlined_call_operand.vmem [shape: f32[16,32], index: 3, kind: output, shape index: {}, may-alias: {0,3}]
  %s4 = sld [smem:[#allocation0]]
  $region45: #{positional_encoding.1} parent=0
    _
  %s6 = ssub.s32 1, %s4
  %s7 = scalar_select 0, %s6, %s4
  loop: start=0, step=1, limit=4
  $region2: #{positional_encoding.1} parent=0 // loop_pre_header
    _
  $region3: #{positional_encoding.1} parent=0 // loop_header
    %s9 = sphi 0, %s13
    %p10 = scmp.ge.s32.totalorder %s9, 4
    %s19 = sphi 0, %s21
    %s22 = sphi 0, %s19
    %s23 = sphi 0, %s22
    %s39 = sphi 0, %s23
    %s45 = sphi 0, %s47
    %s48 = sphi 0, %s45
    %s49 = sphi 0, %s48
    %s65 = sphi 0, %s49
    %s69 = sphi 0, %s69
    %s71 = sphi 0, %s69
    %s72 = sphi 0, %s71
    %s86 = sphi 0, %s72
    %s92 = sphi 0, %s94
    %s95 = sphi 0, %s92
    %s96 = sphi 0, %s95
    %s112 = sphi 0, %s96
  $region4: #{positional_encoding.1} parent=0 // loop_header_branch
    %12 = sbr.rel (%p10) target = $region8
  $region5: #{positional_encoding.1} parent=0 // loop_body
    %s14 = ssub.s32 %s9, 1
    %s15 = ssub.s32 %s9, 2
    %s16 = sadd.s32 %s9, 1
    %s17 = ssub.s32 %s9, %s16
    %p18 = scmp.eq.s32.totalorder %s17, 0
    %s20 = sadd.s32 %s19, 1
    %s21 = scalar_select %p18, %s19, %s20
    %p24 = pneg %p18
    %p25 = scmp.eq.s32.totalorder %s9, 1
    %p26 = por %p24, %p25
    %p27 = scmp.ne.s32.totalorder %s19, %s22
    %p28 = scmp.eq.s32.totalorder %s9, 0
    %p29 = por %p27, %p28
    %p30 = scmp.ne.s32.totalorder %s19, %s22
    %p31 = scmp.eq.s32.totalorder %s14, 1
    %p32 = por %p30, %p31
    %p33 = scmp.ne.s32.totalorder %s22, %s23
    %p34 = scmp.eq.s32.totalorder %s14, 0
    %p35 = por %p33, %p34
    %p36 = scmp.ne.s32.totalorder %s22, %s23
    %p37 = scmp.eq.s32.totalorder %s15, 1
    %p38 = por %p36, %p37
    %p40 = scmp.ne.s32.totalorder %s23, %s39
    %p41 = scmp.eq.s32.totalorder %s15, 0
    %p42 = por %p40, %p41
    %s43 = ssub.s32 %s9, %s16
    %p44 = scmp.eq.s32.totalorder %s43, 0
    %s46 = sadd.s32 %s45, 1
    %s47 = scalar_select %p44, %s45, %s46
    %p50 = pneg %p44
    %p51 = scmp.eq.s32.totalorder %s9, 1
    %p52 = por %p50, %p51
    %p53 = scmp.ne.s32.totalorder %s45, %s48
    %p54 = scmp.eq.s32.totalorder %s9, 0
    %p55 = por %p53, %p54
    %p56 = scmp.ne.s32.totalorder %s45, %s48
    %p57 = scmp.eq.s32.totalorder %s14, 1
    %p58 = por %p56, %p57
    %p59 = scmp.ne.s32.totalorder %s48, %s49
    %p60 = scmp.eq.s32.totalorder %s14, 0
    %p61 = por %p59, %p60
    %p62 = scmp.ne.s32.totalorder %s48, %s49
    %p63 = scmp.eq.s32.totalorder %s15, 1
    %p64 = por %p62, %p63
    %p66 = scmp.ne.s32.totalorder %s49, %s65
    %p67 = scmp.eq.s32.totalorder %s15, 0
    %p68 = por %p66, %p67
    %s70 = sadd.s32 %s69, 1
    %p73 = scmp.eq.s32.totalorder %s9, 1
    %p74 = scmp.ne.s32.totalorder %s69, %s71
    %p75 = scmp.eq.s32.totalorder %s9, 0
    %p76 = por %p74, %p75
    %p77 = scmp.ne.s32.totalorder %s69, %s71
    %p78 = scmp.eq.s32.totalorder %s14, 1
    %p79 = por %p77, %p78
    %p80 = scmp.ne.s32.totalorder %s71, %s72
    %p81 = scmp.eq.s32.totalorder %s14, 0
    %p82 = por %p80, %p81
    %p83 = scmp.ne.s32.totalorder %s71, %s72
    %p84 = scmp.eq.s32.totalorder %s15, 1
    %p85 = por %p83, %p84
    %p87 = scmp.ne.s32.totalorder %s72, %s86
    %p88 = scmp.eq.s32.totalorder %s15, 0
    %p89 = por %p87, %p88
    %s90 = ssub.s32 %s9, %s16
    %p91 = scmp.eq.s32.totalorder %s90, 0
    %s93 = sadd.s32 %s92, 1
    %s94 = scalar_select %p91, %s92, %s93
    %p97 = pneg %p91
    %p98 = scmp.eq.s32.totalorder %s9, 1
    %p99 = por %p97, %p98
    %p100 = scmp.ne.s32.totalorder %s92, %s95
    %p101 = scmp.eq.s32.totalorder %s9, 0
    %p102 = por %p100, %p101
    %p103 = scmp.ne.s32.totalorder %s92, %s95
    %p104 = scmp.eq.s32.totalorder %s14, 1
    %p105 = por %p103, %p104
    %p106 = scmp.ne.s32.totalorder %s95, %s96
    %p107 = scmp.eq.s32.totalorder %s14, 0
    %p108 = por %p106, %p107
    %p109 = scmp.ne.s32.totalorder %s95, %s96
    %p110 = scmp.eq.s32.totalorder %s15, 1
    %p111 = por %p109, %p110
    %p113 = scmp.ne.s32.totalorder %s96, %s112
    %p114 = scmp.eq.s32.totalorder %s15, 0
    %p115 = por %p113, %p114
    %p116 = scmp.le.s32.totalorder 1, %s9
    %p117 = scmp.lt.s32.totalorder %s9, 3
    %p118 = pnand %p116, %p117
    %p119 = pneg %p118
    // Predicated region
    $region9: #{positional_encoding.1} parent=5 // pred_check
      _
    $region10: #{positional_encoding.1} parent=5 // pred_check_branch
      %121 = sbr.rel (%p118) target = $region12
    $region11: #{positional_encoding.1} parent=5 // pred_region
      %s122 = ssub.s32 %s9, 1
      // Predicated region
      $region13: #{positional_encoding.1} parent=11 // pred_check
        %p123 = pneg %p82
      $region14: #{positional_encoding.1} parent=11 // pred_check_branch
        %125 = sbr.rel (%p123) target = $region16
      $region15: #{positional_encoding.1} parent=11 // pred_region
        _
      $region16: #{positional_encoding.1} parent=11 // pred_fallthru
        _
    $region12: #{positional_encoding.1} parent=5 // pred_fallthru
      _
    %p126 = scmp.lt.s32.totalorder %s9, 2
    // Predicated region
    $region17: #{positional_encoding.1} parent=5 // pred_check
      %p127 = pneg %p126
    $region18: #{positional_encoding.1} parent=5 // pred_check_branch
      %129 = sbr.rel (%p127) target = $region20
    $region19: #{positional_encoding.1} parent=5 // pred_region
      // Predicated region
      $region21: #{positional_encoding.1} parent=19 // pred_check
        %p130 = pneg %p29
      $region22: #{positional_encoding.1} parent=19 // pred_check_branch
        %132 = sbr.rel (%p130) target = $region24
      $region23: #{positional_encoding.1} parent=19 // pred_region
        %p133 = scmp.lt.s32.totalorder %s9, 1
        %s134 = scalar_select %p133, %s9, 1
        %s135 = smul.addr %s134, 8
        %s136 = scalar_lea.vmem %s0, %s135
      $region24: #{positional_encoding.1} parent=19 // pred_fallthru
        _
      // Predicated region
      $region25: #{positional_encoding.1} parent=19 // pred_check
        %p137 = pneg %p55
      $region26: #{positional_encoding.1} parent=19 // pred_check_branch
        %139 = sbr.rel (%p137) target = $region28
      $region27: #{positional_encoding.1} parent=19 // pred_region
        %p140 = scmp.lt.s32.totalorder %s9, 1
        %s141 = scalar_select %p140, %s9, 1
        %s142 = smul.addr %s141, 8
        %s143 = scalar_lea.vmem %s1, %s142
      $region28: #{positional_encoding.1} parent=19 // pred_fallthru
        _
    $region20: #{positional_encoding.1} parent=5 // pred_fallthru
      _
    %p144 = scmp.le.s32.totalorder 1, %s9
    %p145 = scmp.lt.s32.totalorder %s9, 3
    %p146 = pnand %p144, %p145
    %p147 = pneg %p146
    // Predicated region
    $region29: #{positional_encoding.1} parent=5 // pred_check
      _
    $region30: #{positional_encoding.1} parent=5 // pred_check_branch
      %149 = sbr.rel (%p146) target = $region32
    $region31: #{positional_encoding.1} parent=5 // pred_region
      %s150 = ssub.s32 %s9, 1
      %p151 = scmp.lt.s32.totalorder %s14, 1
      %s152 = scalar_select %p151, %s14, 1
      %s153 = smul.addr %s152, 8
      %s154 = scalar_lea.vmem %s0, %s153
      %p155 = pneg %p35
      %p156 = pneg %p32
      %p157 = scmp.lt.s32.totalorder %s14, 1
      %s158 = scalar_select %p157, %s14, 1
      %s159 = smul.addr %s158, 8
      %s160 = scalar_lea.vmem %s1, %s159
      %p161 = pneg %p61
      %p162 = pneg %p58
      %p163 = pneg %p82
      %p164 = pneg %p79
      %p165 = pneg %p108
      %p166 = pneg %p105
      %p167 = scmp.lt.s32.totalorder %s14, 1
      %s168 = scalar_select %p167, %s14, 1
      %s169 = smul.addr %s168, 8
      %s170 = scalar_lea.vmem %s3, %s169
      %p171 = scmp.lt.s32.totalorder %s14, 1
      %s172 = scalar_select %p171, %s14, 1
      %s173 = smul.addr %s172, 8
      %s174 = scalar_lea.vmem %s0, %s173
      %p175 = scmp.lt.s32.totalorder %s14, 1
      %s176 = scalar_select %p175, %s14, 1
      %s177 = smul.addr %s176, 8
      %s178 = scalar_lea.vmem %s1, %s177
      %p179 = scmp.lt.s32.totalorder %s14, 1
      %s180 = scalar_select %p179, %s14, 1
      %s181 = smul.addr %s180, 8
      %s182 = scalar_lea.vmem %s3, %s181
      %v183 = vld [vmem:[%s2] sm:$0x1]
      %v184 = vld [vmem:[%s2 + $0x1] sm:$0x1]
      %v185 = vld [vmem:[%s178] sm:$0xff]
      %187 = vset.pattern.permute.xlu0 0
      %188 = vperm.xlu0 %187, %v185
      %v189 = vpop.permute.xlu0 %188
      %v191 = vlaneseq
      %v192 = vshrl.u32 %v191, 7
      %v193 = vsub.s32 0, %v192
      %v194 = vrot.slane %v183, %v193
      %v195 = vmul.f32 %v189, %v194
      %v196 = vlaneseq
      %v197 = vshrl.u32 %v196, 7
      %v198 = vsub.s32 0, %v197
      %v199 = vrot.slane %v184, %v198
      %v200 = vadd.f32 %v195, %v199
      %v201 = vand.u32 2147483647, %v200
      %vm202 = vcmp.le.f32.partialorder %v201, 0.7853982
      %vm203 = vcmp.lt.s32.totalorder %v200, 0
      %v204 = vand.u32 %v200, 2139095040
      %v205 = vshrl.u32 %v204, 23
      %v206 = vsub.s32 %v205, 127
      %v207 = vand.u32 2147483647, %v200
      %v208 = vand.u32 %v207, 8388607
      %v209 = vor.u32 %v208, 8388608
      %v210 = vsub.s32 0, %v209
      %v211 = vadd.s32 %v206, 1
      %vm212 = vcmp.gt.s32.totalorder %v211, 0
      %v213 = vsel %vm212, %v211, 0
      %v214 = vshrl.u32 %v213, 5
      %v215 = vand.u32 %v213, 31
      %v216 = vsub.s32 32, %v215
      %v217 = vshrl.u32 683565275, %v216
      %v218 = vshll.u32 683565275, %v215
      %v219 = vshrl.u32 2475754826, %v216
      %v220 = vor.u32 %v218, %v219
      %v221 = vshll.u32 2475754826, %v215
      %v222 = vshrl.u32 2131351028, %v216
      %v223 = vor.u32 %v221, %v222
      %v224 = vshll.u32 2131351028, %v215
      %v225 = vshrl.u32 2102212464, %v216
      %v226 = vor.u32 %v224, %v225
      %v227 = vshll.u32 2102212464, %v215
      %v228 = vshrl.u32 920167782, %v216
      %v229 = vor.u32 %v227, %v228
      %v230 = vshll.u32 920167782, %v215
      %v231 = vshrl.u32 1326507024, %v216
      %v232 = vor.u32 %v230, %v231
      %vm233 = vcmp.lt.s32.totalorder %v214, 1
      %vm234 = vcmp.lt.s32.totalorder %v214, 2
      %vm235 = vcmp.lt.s32.totalorder %v214, 3
      %vm236 = vcmp.lt.s32.totalorder %v214, 4
      %v237 = vsel %vm233, %v217, %v220
      %v238 = vsel %vm236, %v226, 2102212464
      %v239 = vsel %vm235, %v223, %v238
      %v240 = vsel %vm234, %v237, %v239
      %v241 = vsel %vm233, %v220, %v223
      %v242 = vsel %vm236, %v229, 920167782
      %v243 = vsel %vm235, %v226, %v242
      %v244 = vsel %vm234, %v241, %v243
      %v245 = vsel %vm233, %v223, %v226
      %v246 = vsel %vm236, %v232, 1326507024
      %v247 = vsel %vm235, %v229, %v246
      %v248 = vsel %vm234, %v245, %v247
      %v249 = vshll.u32 %v209, 8
      %v250 = vmul.u32.u64.compose %v249, %v248
      %v251 = vextract.low.u32 %v250
      %v252 = vextract.high.u32 %v250
      %v253 = vmul.u32.u64.compose %v249, %v244
      %v254 = vextract.low.u32 %v253
      %v255 = vextract.high.u32 %v253
      %v256 = vmul.u32 %v249, %v240
      %v257 = vadd.s32 %v252, %v254
      %vm258 = vc.u32 %v252, %v254
      %v259 = vadd.s32 %v255, 1
      %v260 = vsel %vm258, %v259, %v255
      %v261 = vadd.s32 %v256, %v260
      %v262 = vadd.s32 %v261, 536870912
      %v263 = vshrl.u32 %v262, 30
      %v264 = vshll.u32 %v263, 30
      %v265 = vsub.s32 %v261, %v264
      %vm266 = vcmp.lt.s32.totalorder %v265, 0
      %v267 = vsub.s32 0, %v265
      %v268 = vsel %vm266, %v267, %v265
      %v269 = vclz %v268
      %v270 = vsub.s32 %v269, 2
      %vm271 = vcmp.gt.s32.totalorder 0, %v270
      %v272 = vsel %vm271, 0, %v270
      %v273 = vsub.s32 32, %v272
      %v274 = vshll.u32 %v265, %v272
      %v275 = vshrl.u32 %v257, %v273
      %v276 = vor.u32 %v274, %v275
      %v277 = vsub.s32 4294967266, %v272
      %v278 = vadd.s32 %v277, 127
      %v279 = vshll.u32 %v278, 23
      %v280 = vor.u32 4788187, %v279
      %v281 = vand.u32 2147483647, %v280
      %v283 = vcvt.s32.f32 %v276
      %v284 = vmul.f32 %v283, %v281
      %v285 = vxor.u32 %v284, 2147483648
      %v286 = vsel %vm203, %v285, %v284
      %v287 = vsub.s32 4, %v263
      %v288 = vsel %vm203, %v287, %v263
      %v289 = vsel %vm202, %v200, %v286
      %v290 = vsel %vm202, 0, %v288
      %v291 = vcosq.f32.pop %v289
      %v292 = vsinq.f32.pop %v289
      %vm293 = vweird.f32 %v200
      %v294 = vadd.s32 %v290, 3
      %v295 = vand.u32 %v294, 3
      %vm296 = vcmp.lt.s32.totalorder %v295, 2
      %vm297 = vcmp.eq.s32.totalorder %v295, 0
      %v298 = vxor.u32 %v292, 2147483648
      %v299 = vsel %vm297, %v291, %v298
      %vm300 = vcmp.eq.s32.totalorder %v295, 2
      %v301 = vxor.u32 %v291, 2147483648
      %v302 = vsel %vm300, %v301, %v292
      %v303 = vsel %vm296, %v299, %v302
      %v304 = vsel %vm293, nan, %v303
      %v305 = vld [vmem:[%s174] sm:$0xff]
      %v306 = vadd.f32 %v305, %v304
      %vm307 = vcmask 261120
      %308 = vst.msk [vmem:[%s182] sm:$0xff] %vm307, %v306
      %p309 = scmp.lt.s32.totalorder %s14, 1
      %s310 = scalar_select %p309, %s14, 1
      %s311 = smul.addr %s310, 8
      %s312 = scalar_lea.vmem %s3, %s311
      // Predicated region
      $region33: #{positional_encoding.1} parent=31 // pred_check
        %p313 = pneg %p105
      $region34: #{positional_encoding.1} parent=31 // pred_check_branch
        %315 = sbr.rel (%p313) target = $region36
      $region35: #{positional_encoding.1} parent=31 // pred_region
        _
      $region36: #{positional_encoding.1} parent=31 // pred_fallthru
        _
    $region32: #{positional_encoding.1} parent=5 // pred_fallthru
      _
    %p316 = scmp.le.s32.totalorder 2, %s9
    // Predicated region
    $region37: #{positional_encoding.1} parent=5 // pred_check
      %p317 = pneg %p316
    $region38: #{positional_encoding.1} parent=5 // pred_check_branch
      %319 = sbr.rel (%p317) target = $region40
    $region39: #{positional_encoding.1} parent=5 // pred_region
      %s320 = ssub.s32 %s9, 2
      // Predicated region
      $region41: #{positional_encoding.1} parent=39 // pred_check
        %p321 = pneg %p111
      $region42: #{positional_encoding.1} parent=39 // pred_check_branch
        %323 = sbr.rel (%p321) target = $region44
      $region43: #{positional_encoding.1} parent=39 // pred_region
        %p324 = scmp.lt.s32.totalorder %s15, 1
        %s325 = scalar_select %p324, %s15, 1
        %s326 = smul.addr %s325, 8
        %s327 = scalar_lea.vmem %s3, %s326
      $region44: #{positional_encoding.1} parent=39 // pred_fallthru
        _
    $region40: #{positional_encoding.1} parent=5 // pred_fallthru
      _
  $region6: #{positional_encoding.1} parent=0 // loop_footer
    %s13 = sadd.s32 1, %s9
  $region7: #{positional_encoding.1} parent=0 // loop_footer_branch
    %8 = sbr.rel target = $region3
  $region8: #{positional_encoding.1} parent=0 // loop_exit
    _

</llo_original>
